<compile_context>
chip_gen: v7x
topology: tpu7x:2x2x1
jax: 0.10.0
libtpu: 0.0.40
codegen_flags: <defaults>
</compile_context>

<pallas_src>
import functools

import jax
import jax.numpy as jnp
from jax.experimental import pallas as pl
from jax.experimental.pallas import tpu as pltpu


def _fourier_kan_kernel(x_ref, w_ref, b_ref, o_ref, *, gridsize, matmul_dtype):
    # x_ref: (TN, D)        row tile of flattened inputs
    # w_ref: (2*G*D, TOUT)  stacked [cos_w; sin_w], col-padded to the out tile
    # b_ref: (1, TOUT)      bias (padded)
    # o_ref: (TN, TOUT)     output tile
    g = gridsize
    x = x_ref[...].astype(jnp.float32)              # (TN, D)
    c1 = jnp.cos(x)                                 # only 2*TN*D EUP transcendentals
    s1 = jnp.sin(x)
    cos_strips = [c1]
    sin_strips = [s1]
    ck, sk = c1, s1
    # Angle-addition recurrence (VPU FMAs, unrolled):
    #   cos((k+1)x) = cos(kx)cos(x) - sin(kx)sin(x)
    #   sin((k+1)x) = sin(kx)cos(x) + cos(kx)sin(x)
    for _ in range(1, g):
        ck, sk = ck * c1 - sk * s1, sk * c1 + ck * s1
        cos_strips.append(ck)
        sin_strips.append(sk)
    # One lane-dense slab: column = k*D + i for cos((k+1)*x_i), sin half offset
    # by G*D -- matches the host-side weight layout.  Single concatenate
    # instead of 2*G masked D-wide stores.
    feat = jnp.concatenate(cos_strips + sin_strips, axis=-1)    # (TN, 2*G*D)
    y = jnp.dot(feat.astype(matmul_dtype), w_ref[...],
                preferred_element_type=jnp.float32)
    y = y + b_ref[...].astype(jnp.float32)          # broadcast (1, TOUT)
    o_ref[...] = y.astype(o_ref.dtype)


def _vmem_capacity_bytes():
    try:
        return int(pltpu.get_tpu_info().vmem_capacity_bytes)
    except Exception:
        return 64 * 1024 * 1024   # conservative fallback: v7x per-TensorCore VMEM


def _pick_row_tile(n, tn_cap):
    """Pick (tn, n_pad): tn a multiple of 8, <= tn_cap.  Prefer a tile that
    divides n exactly (no host-side pad / full HBM copy of x); else pad up."""
    n8 = pl.cdiv(n, 8) * 8
    tn_cap = max(8, min(int(tn_cap), n8))
    tn_cap = (tn_cap // 8) * 8
    if n == n8:
        cand = tn_cap
        while cand >= 8:
            if n8 % cand == 0 and (cand >= 128 or cand == tn_cap):
                return cand, n8
            cand -= 8
    return tn_cap, pl.cdiv(n, tn_cap) * tn_cap


def fourier_kan_forward(x, fouriercoeffs, bias, *,
                        tile_n=512, tile_out=512, matmul_dtype=jnp.bfloat16):
    """x: (..., inputdim); fouriercoeffs: (2, outdim, inputdim, gridsize);
    bias: (1, outdim) or None.  matmul_dtype: MXU operand dtype for the fused
    feature x weight matmul (bf16 default; pass jnp.float32 for strict f32)."""
    *lead, inputdim = x.shape
    two, outdim, indim_c, gridsize = fouriercoeffs.shape
    assert two == 2 and indim_c == inputdim

    x2 = x.reshape(-1, inputdim)
    n = x2.shape[0]
    dg2 = 2 * gridsize * inputdim
    xb = jnp.dtype(x2.dtype).itemsize
    wb = jnp.dtype(matmul_dtype).itemsize

    # --- Generation-aware VMEM budget (v7x: 64 MiB, v5e/v6e: 128 MiB).
    capacity = _vmem_capacity_bytes()
    budget = (capacity * 3) // 4

    # --- Out tile: multiple of 128 lanes (unmasked vst / full MXU N dim),
    # capped so the double-buffered weight block uses at most ~half the budget.
    tout_vmem_cap = max(128, (((budget // 2) // max(2 * dg2 * wb, 1)) // 128) * 128)
    tout_cap = max(128, min((int(tile_out) // 128) * 128, tout_vmem_cap))
    out128 = pl.cdiv(outdim, 128) * 128
    if out128 <= tout_cap:
        tout, out_pad = out128, out128             # single out tile
    else:
        # Prefer >=256-wide out tiles (256-wide v6e/v7x MXU); among candidates
        # pick the one with the least column padding (larger tile on ties).
        cands = [c for c in range(tout_cap, 127, -128) if c >= 256] or [tout_cap]
        tout, out_pad = None, None
        for cand in cands:
            padded = pl.cdiv(outdim, cand) * cand
            if out_pad is None or padded < out_pad:
                tout, out_pad = cand, padded

    # --- Row tile: fill the remaining VMEM budget (x + output double-buffered,
    # plus the in-flight f32 strips + casted matmul copy of the feature slab).
    per_row = 2 * inputdim * xb + 8 * tout + dg2 * (4 + wb)
    w_block_bytes = 2 * dg2 * tout * wb
    b_block_bytes = 2 * tout * 4
    avail = max(budget - w_block_bytes - b_block_bytes, 8 * per_row)
    tn_cap = max(8, min(int(tile_n), avail // per_row))
    tn, n_pad = _pick_row_tile(n, tn_cap)
    if n_pad != n:
        x2 = jnp.pad(x2, ((0, n_pad - n), (0, 0)))
    # TODO(synk): tile the K (=2*G*D) contraction dim too if dg2*128 weights
    # alone ever exceed the VMEM budget (needs a third "arbitrary" grid axis
    # with an accumulator).

    # --- Weights: stacked fused matrix, feature index g-major (col = g*D + i),
    # sin block offset by G*D.  Host-side reshape/transpose/pad/cast is free.
    fc = fouriercoeffs.astype(jnp.float32)
    w_cos = jnp.transpose(fc[0], (2, 1, 0)).reshape(gridsize * inputdim, outdim)
    w_sin = jnp.transpose(fc[1], (2, 1, 0)).reshape(gridsize * inputdim, outdim)
    w = jnp.concatenate([w_cos, w_sin], axis=0)        # (2*G*D, OUT)
    if out_pad != outdim:
        w = jnp.pad(w, ((0, 0), (0, out_pad - outdim)))
    w = w.astype(matmul_dtype)
    if bias is None:
        b2 = jnp.zeros((1, out_pad), jnp.float32)
    else:
        b2 = jnp.asarray(bias, jnp.float32).reshape(1, outdim)
        if out_pad != outdim:
            b2 = jnp.pad(b2, ((0, 0), (0, out_pad - outdim)))

    # --- Always set the scoped-VMEM limit (v5e default is ~16 MiB); clamp to
    # 90% of this generation's physical capacity (never above 64 MiB on v7x).
    footprint = w_block_bytes + b_block_bytes + tn * per_row
    vmem_limit = int(min((capacity * 9) // 10,
                         max(32 * 1024 * 1024,
                             footprint + footprint // 2 + (4 << 20))))

    kernel = functools.partial(_fourier_kan_kernel, gridsize=gridsize,
                               matmul_dtype=matmul_dtype)

    # Grid: out-tile axis OUTER, row-tile axis INNER.  The weight/bias index
    # maps are constant along the inner axis, so Pallas DMAs the (2*G*D, tout)
    # weight block only when the out tile changes (full matrix once total);
    # only the small (tn, D) x block is re-fetched each step.
    grid = (out_pad // tout, n_pad // tn)

    y = pl.pallas_call(
        kernel,
        out_shape=jax.ShapeDtypeStruct((n_pad, out_pad), jnp.float32),
        grid_spec=pltpu.PrefetchScalarGridSpec(
            num_scalar_prefetch=0,
            grid=grid,
            in_specs=[
                pl.BlockSpec((tn, inputdim), lambda j, i: (i, 0)),
                pl.BlockSpec((dg2, tout), lambda j, i: (0, j)),
                pl.BlockSpec((1, tout), lambda j, i: (0, j)),
            ],
            out_specs=pl.BlockSpec((tn, tout), lambda j, i: (i, j)),
        ),
        compiler_params=pltpu.CompilerParams(
            # No accumulator / cross-step scratch: both axes are independent,
            # so both can be megacore-sharded (2 TensorCores on v7x).
            dimension_semantics=("parallel", "parallel"),
            vmem_limit_bytes=vmem_limit),
    )(x2, w, b2)

    y = y[:n, :outdim]
    return y.reshape(*lead, outdim)


def fourier_kan_reference(x, fouriercoeffs, bias):
    """Pure-JAX reference matching the PyTorch forward exactly."""
    *lead, inputdim = x.shape
    _, outdim, _, gridsize = fouriercoeffs.shape
    x2 = x.reshape(-1, inputdim).astype(jnp.float32)
    k = jnp.arange(1, gridsize + 1, dtype=jnp.float32).reshape(1, 1, 1, gridsize)
    xr = x2.reshape(x2.shape[0], 1, x2.shape[1], 1)
    c = jnp.cos(k * xr)
    s = jnp.sin(k * xr)
    y = jnp.sum(c * fouriercoeffs[0:1], axis=(-2, -1))
    y = y + jnp.sum(s * fouriercoeffs[1:2], axis=(-2, -1))
    if bias is not None:
        y = y + bias
    return y.reshape(*lead, outdim)


if __name__ == "__main__":
    # Module hyperparameters (small, but layout-meaningful).
    inputdim = 4
    outdim = 32
    gridsize = 8
    batch, seq = 2, 8  # x: (batch, seq, inputdim) -> y: (batch, seq, outdim)

    key = jax.random.PRNGKey(0)
    kx, kw = jax.random.split(key)

    # Deterministic parameter init (smooth_initialization=False):
    #   randn(2, outdim, inputdim, gridsize) / (sqrt(inputdim) * sqrt(gridsize))
    fouriercoeffs = (
        jax.random.normal(kw, (2, outdim, inputdim, gridsize), jnp.float32)
        / (jnp.sqrt(jnp.float32(inputdim)) * jnp.sqrt(jnp.float32(gridsize)))
    )
    bias = jnp.zeros((1, outdim), jnp.float32)

    x = jax.random.normal(kx, (batch, seq, inputdim), jnp.float32)

    y_ref = fourier_kan_reference(x, fouriercoeffs, bias)

    # Strict-f32 MXU path: tight tolerance.
    y32 = jax.block_until_ready(
        fourier_kan_forward(x, fouriercoeffs, bias, matmul_dtype=jnp.float32))
    assert y32.shape == (batch, seq, outdim), y32.shape
    assert jnp.allclose(y32, y_ref, atol=1e-4, rtol=1e-4), (
        float(jnp.max(jnp.abs(y32 - y_ref))))

    # Default bf16 MXU path (f32 accumulation): looser tolerance.
    y16 = jax.block_until_ready(fourier_kan_forward(x, fouriercoeffs, bias))
    assert y16.shape == (batch, seq, outdim), y16.shape
    assert jnp.allclose(y16, y_ref, atol=5e-2, rtol=5e-2), (
        float(jnp.max(jnp.abs(y16 - y_ref))))

    print("KERNEL_OK")
</pallas_src>

<mosaic_0001>
module attributes {stable_mosaic.version = 11 : i64} {
  func.func @_fourier_kan_kernel(%arg0: i32, %arg1: i32, %arg2: memref<16x4xf32, #tpu.memory_space<vmem>>, %arg3: memref<64x128xf32, #tpu.memory_space<vmem>>, %arg4: memref<1x128xf32, #tpu.memory_space<vmem>>, %arg5: memref<16x128xf32, #tpu.memory_space<vmem>>) attributes {dimension_semantics = [#tpu.dimension_semantics<parallel>, #tpu.dimension_semantics<parallel>], iteration_bounds = array<i64: 1, 1>, scalar_prefetch = 0 : i64, scratch_operands = 0 : i64, tpu.core_type = #tpu.core_type<tc>, window_params = [{transform_indices = @transform_0, window_bounds = array<i64: 16, 4>}, {transform_indices = @transform_1, window_bounds = array<i64: 64, 128>}, {transform_indices = @transform_2, window_bounds = array<i64: 1, 128>}, {transform_indices = @transform_3, window_bounds = array<i64: 16, 128>}]} {
    %c0 = arith.constant 0 : index
    %c0_0 = arith.constant 0 : index
    %0 = vector.load %arg2[%c0, %c0_0] : memref<16x4xf32, #tpu.memory_space<vmem>>, vector<16x4xf32>
    %1 = math.cos %0 : vector<16x4xf32>
    %2 = math.sin %0 : vector<16x4xf32>
    %3 = arith.mulf %1, %1 : vector<16x4xf32>
    %4 = arith.mulf %2, %2 : vector<16x4xf32>
    %5 = arith.subf %3, %4 : vector<16x4xf32>
    %6 = arith.mulf %2, %1 : vector<16x4xf32>
    %7 = arith.mulf %1, %2 : vector<16x4xf32>
    %8 = arith.addf %6, %7 : vector<16x4xf32>
    %9 = arith.mulf %5, %1 : vector<16x4xf32>
    %10 = arith.mulf %8, %2 : vector<16x4xf32>
    %11 = arith.subf %9, %10 : vector<16x4xf32>
    %12 = arith.mulf %8, %1 : vector<16x4xf32>
    %13 = arith.mulf %5, %2 : vector<16x4xf32>
    %14 = arith.addf %12, %13 : vector<16x4xf32>
    %15 = arith.mulf %11, %1 : vector<16x4xf32>
    %16 = arith.mulf %14, %2 : vector<16x4xf32>
    %17 = arith.subf %15, %16 : vector<16x4xf32>
    %18 = arith.mulf %14, %1 : vector<16x4xf32>
    %19 = arith.mulf %11, %2 : vector<16x4xf32>
    %20 = arith.addf %18, %19 : vector<16x4xf32>
    %21 = arith.mulf %17, %1 : vector<16x4xf32>
    %22 = arith.mulf %20, %2 : vector<16x4xf32>
    %23 = arith.subf %21, %22 : vector<16x4xf32>
    %24 = arith.mulf %20, %1 : vector<16x4xf32>
    %25 = arith.mulf %17, %2 : vector<16x4xf32>
    %26 = arith.addf %24, %25 : vector<16x4xf32>
    %27 = arith.mulf %23, %1 : vector<16x4xf32>
    %28 = arith.mulf %26, %2 : vector<16x4xf32>
    %29 = arith.subf %27, %28 : vector<16x4xf32>
    %30 = arith.mulf %26, %1 : vector<16x4xf32>
    %31 = arith.mulf %23, %2 : vector<16x4xf32>
    %32 = arith.addf %30, %31 : vector<16x4xf32>
    %33 = arith.mulf %29, %1 : vector<16x4xf32>
    %34 = arith.mulf %32, %2 : vector<16x4xf32>
    %35 = arith.subf %33, %34 : vector<16x4xf32>
    %36 = arith.mulf %32, %1 : vector<16x4xf32>
    %37 = arith.mulf %29, %2 : vector<16x4xf32>
    %38 = arith.addf %36, %37 : vector<16x4xf32>
    %39 = arith.mulf %35, %1 : vector<16x4xf32>
    %40 = arith.mulf %38, %2 : vector<16x4xf32>
    %41 = arith.subf %39, %40 : vector<16x4xf32>
    %42 = arith.mulf %38, %1 : vector<16x4xf32>
    %43 = arith.mulf %35, %2 : vector<16x4xf32>
    %44 = arith.addf %42, %43 : vector<16x4xf32>
    %45 = tpu.concatenate %1, %5, %11, %17, %23, %29, %35, %41, %2, %8, %14, %20, %26, %32, %38, %44 in 1 : vector<16x4xf32>, vector<16x4xf32>, vector<16x4xf32>, vector<16x4xf32>, vector<16x4xf32>, vector<16x4xf32>, vector<16x4xf32>, vector<16x4xf32>, vector<16x4xf32>, vector<16x4xf32>, vector<16x4xf32>, vector<16x4xf32>, vector<16x4xf32>, vector<16x4xf32>, vector<16x4xf32>, vector<16x4xf32> -> vector<16x64xf32>
    %c0_1 = arith.constant 0 : index
    %c0_2 = arith.constant 0 : index
    %46 = vector.load %arg3[%c0_1, %c0_2] : memref<64x128xf32, #tpu.memory_space<vmem>>, vector<64x128xf32>
    %cst = arith.constant dense<0.000000e+00> : vector<16x128xf32>
    %47 = tpu.matmul %45, %46, %cst {dimension_numbers = #tpu.dot_dimension_numbers<[1], [0], [0], [1], [0, 0, 1, 1], [], []>} : vector<16x64xf32>, vector<64x128xf32>, vector<16x128xf32> -> vector<16x128xf32>
    %c0_3 = arith.constant 0 : index
    %c0_4 = arith.constant 0 : index
    %48 = vector.load %arg4[%c0_3, %c0_4] : memref<1x128xf32, #tpu.memory_space<vmem>>, vector<1x128xf32>
    %49 = vector.broadcast %48 : vector<1x128xf32> to vector<16x128xf32>
    %50 = arith.addf %47, %49 : vector<16x128xf32>
    %c0_5 = arith.constant 0 : index
    %c0_6 = arith.constant 0 : index
    %51 = vector.load %arg5[%c0_5, %c0_6] : memref<16x128xf32, #tpu.memory_space<vmem>>, vector<16x128xf32>
    tpu.vector_store %arg5[%c0_5, %c0_6], %50 {strides = array<i32>} : memref<16x128xf32, #tpu.memory_space<vmem>>, vector<16x128xf32>,
    return
  }
  func.func @transform_0(%arg0: i32, %arg1: i32) -> (i32, i32) {
    %c0_i32 = arith.constant 0 : i32
    %c0_i32_0 = arith.constant 0 : i32
    return %arg1, %c0_i32 : i32, i32
  }
  func.func @transform_1(%arg0: i32, %arg1: i32) -> (i32, i32) {
    %c0_i32 = arith.constant 0 : i32
    %c0_i32_0 = arith.constant 0 : i32
    return %c0_i32, %arg0 : i32, i32
  }
  func.func @transform_2(%arg0: i32, %arg1: i32) -> (i32, i32) {
    %c0_i32 = arith.constant 0 : i32
    %c0_i32_0 = arith.constant 0 : i32
    return %c0_i32, %arg0 : i32, i32
  }
  func.func @transform_3(%arg0: i32, %arg1: i32) -> (i32, i32) {
    %c0_i32 = arith.constant 0 : i32
    return %arg1, %arg0 : i32, i32
  }
}

</mosaic_0001>

<llo_original>
// kernel: tpu_custom_call.1
$region0: #{tpu_custom_call.1}
  #allocation0 [shape = 'u32[]', space=smem, size = 0x4, offset = 0x4, fixed_abs, tag = 'smem constant byte address 0x4 - core index']
  #allocation1 [shape = 'u32[144,128]{1,0:T(1,128)}', space=vmem, size = 0x12000, scoped, tag = 'internal scratch']
  %s0 = inlined_call_operand.vmem [shape: f32[16,4], index: 0, kind: input, shape index: {}]
  %s1 = inlined_call_operand.hbm [shape: f32[64,128], index: 1, kind: input, shape index: {}]
  %s2 = inlined_call_operand.vmem [shape: f32[1,128], index: 2, kind: input, shape index: {}]
  %s3 = inlined_call_operand.hbm [shape: f32[16,128], index: 3, kind: output, shape index: {}]
  %s4 = sld [smem:[#allocation0]]
  $region26: #{tpu_custom_call.1} parent=0
    _
  %s6 = ssub.s32 1, %s4
  %s7 = scalar_select 0, %s6, %s4
  $region1: #{tpu_custom_call.1} parent=0
    #allocation2 [shape = 'u8[32768]{0}', space=vmem, size = 0x8000, scoped, tag = 'input window, operand 1, single buffered']
    #allocation3 [shape = 's32[1]{0}', space=sflag, size = 0x4, scoped, tag = 'scoped memory for tpu_custom_call.1']
    #allocation4 [shape = 's32[1]{0}', space=sflag, size = 0x4, scoped, tag = 'scoped memory for tpu_custom_call.1']
    #allocation5 [shape = 'u8[8192]{0}', space=vmem, size = 0x2000, scoped, tag = 'output window, operand 0, single buffered']
    %8 = vsyncpa [#allocation3], 0
    %9 = vsyncpa [#allocation4], 0
    // Predicated region
    $region2: #{tpu_custom_call.1} parent=1 // pred_check
      _
    $region3: #{tpu_custom_call.1} parent=1 // pred_check_branch
      %11 = sbr.rel (0) target = $region5
    $region4: #{tpu_custom_call.1} parent=1 // pred_region
      _
    $region5: #{tpu_custom_call.1} parent=1 // pred_fallthru
      _
    // Predicated region
    $region6: #{tpu_custom_call.1} parent=1 // pred_check
      _
    $region7: #{tpu_custom_call.1} parent=1 // pred_check_branch
      %13 = sbr.rel (0) target = $region9
    $region8: #{tpu_custom_call.1} parent=1 // pred_region
      %s15 = ssub.s32 1024, 1024
      %16 = vsyncadd [#allocation3], %s15
      %s17 = sshll.u32 [#allocation2], 4
      %s18 = int_to_ptr.vmem [resolvable:$true] %s17
      %23 = dma.hbm_to_vmem [thread:$0]  %s1, 1024, %s18, [#allocation3], 128, 128, 8
    $region9: #{tpu_custom_call.1} parent=1 // pred_fallthru
      _
    // Predicated region
    $region10: #{tpu_custom_call.1} parent=1 // pred_check
      _
    $region11: #{tpu_custom_call.1} parent=1 // pred_check_branch
      %25 = sbr.rel (0) target = $region13
    $region12: #{tpu_custom_call.1} parent=1 // pred_region
      _
    $region13: #{tpu_custom_call.1} parent=1 // pred_fallthru
      _
    // Predicated region
    $region14: #{tpu_custom_call.1} parent=1 // pred_check
      _
    $region15: #{tpu_custom_call.1} parent=1 // pred_check_branch
      %27 = sbr.rel (0) target = $region17
    $region16: #{tpu_custom_call.1} parent=1 // pred_region
      %28 = dma.done [#allocation3], 1024
    $region17: #{tpu_custom_call.1} parent=1 // pred_fallthru
      _
    %v29 = vld [vmem:[%s0] sm:$0xff]
    %v30 = vld [vmem:[%s0 + $0x8] sm:$0xff]
    %v31 = vand.u32 2147483647, %v29
    %vm32 = vcmp.le.f32.partialorder %v31, 0.7853982
    %vm33 = vcmp.lt.s32.totalorder %v29, 0
    %v34 = vand.u32 %v29, 2139095040
    %v35 = vshrl.u32 %v34, 23
    %v36 = vsub.s32 %v35, 127
    %v37 = vand.u32 2147483647, %v29
    %v38 = vand.u32 %v37, 8388607
    %v39 = vor.u32 %v38, 8388608
    %v40 = vsub.s32 0, %v39
    %v41 = vadd.s32 %v36, 1
    %vm42 = vcmp.gt.s32.totalorder %v41, 0
    %v43 = vsel %vm42, %v41, 0
    %v44 = vshrl.u32 %v43, 5
    %v45 = vand.u32 %v43, 31
    %v46 = vsub.s32 32, %v45
    %v47 = vshrl.u32 683565275, %v46
    %v48 = vshll.u32 683565275, %v45
    %v49 = vshrl.u32 2475754826, %v46
    %v50 = vor.u32 %v48, %v49
    %v51 = vshll.u32 2475754826, %v45
    %v52 = vshrl.u32 2131351028, %v46
    %v53 = vor.u32 %v51, %v52
    %v54 = vshll.u32 2131351028, %v45
    %v55 = vshrl.u32 2102212464, %v46
    %v56 = vor.u32 %v54, %v55
    %v57 = vshll.u32 2102212464, %v45
    %v58 = vshrl.u32 920167782, %v46
    %v59 = vor.u32 %v57, %v58
    %v60 = vshll.u32 920167782, %v45
    %v61 = vshrl.u32 1326507024, %v46
    %v62 = vor.u32 %v60, %v61
    %vm63 = vcmp.lt.s32.totalorder %v44, 1
    %vm64 = vcmp.lt.s32.totalorder %v44, 2
    %vm65 = vcmp.lt.s32.totalorder %v44, 3
    %vm66 = vcmp.lt.s32.totalorder %v44, 4
    %v67 = vsel %vm63, %v47, %v50
    %v68 = vsel %vm66, %v56, 2102212464
    %v69 = vsel %vm65, %v53, %v68
    %v70 = vsel %vm64, %v67, %v69
    %v71 = vsel %vm63, %v50, %v53
    %v72 = vsel %vm66, %v59, 920167782
    %v73 = vsel %vm65, %v56, %v72
    %v74 = vsel %vm64, %v71, %v73
    %v75 = vsel %vm63, %v53, %v56
    %v76 = vsel %vm66, %v62, 1326507024
    %v77 = vsel %vm65, %v59, %v76
    %v78 = vsel %vm64, %v75, %v77
    %v79 = vshll.u32 %v39, 8
    %v80 = vmul.u32.u64.compose %v79, %v78
    %v81 = vextract.low.u32 %v80
    %v82 = vextract.high.u32 %v80
    %v83 = vmul.u32.u64.compose %v79, %v74
    %v84 = vextract.low.u32 %v83
    %v85 = vextract.high.u32 %v83
    %v86 = vmul.u32 %v79, %v70
    %v87 = vadd.s32 %v82, %v84
    %vm88 = vc.u32 %v82, %v84
    %v89 = vadd.s32 %v85, 1
    %v90 = vsel %vm88, %v89, %v85
    %v91 = vadd.s32 %v86, %v90
    %v92 = vadd.s32 %v91, 536870912
    %v93 = vshrl.u32 %v92, 30
    %v94 = vshll.u32 %v93, 30
    %v95 = vsub.s32 %v91, %v94
    %vm96 = vcmp.lt.s32.totalorder %v95, 0
    %v97 = vsub.s32 0, %v95
    %v98 = vsel %vm96, %v97, %v95
    %v99 = vclz %v98
    %v100 = vsub.s32 %v99, 2
    %vm101 = vcmp.gt.s32.totalorder 0, %v100
    %v102 = vsel %vm101, 0, %v100
    %v103 = vsub.s32 32, %v102
    %v104 = vshll.u32 %v95, %v102
    %v105 = vshrl.u32 %v87, %v103
    %v106 = vor.u32 %v104, %v105
    %v107 = vsub.s32 4294967266, %v102
    %v108 = vadd.s32 %v107, 127
    %v109 = vshll.u32 %v108, 23
    %v110 = vor.u32 4788187, %v109
    %v111 = vand.u32 2147483647, %v110
    %v113 = vcvt.s32.f32 %v106
    %v114 = vmul.f32 %v113, %v111
    %v115 = vxor.u32 %v114, 2147483648
    %v116 = vsel %vm33, %v115, %v114
    %v117 = vsub.s32 4, %v93
    %v118 = vsel %vm33, %v117, %v93
    %v119 = vsel %vm32, %v29, %v116
    %v120 = vsel %vm32, 0, %v118
    %v121 = vcosq.f32.pop %v119
    %v122 = vsinq.f32.pop %v119
    %vm123 = vweird.f32 %v29
    %v124 = vand.u32 %v120, 3
    %vm125 = vcmp.lt.s32.totalorder %v124, 2
    %vm126 = vcmp.eq.s32.totalorder %v124, 0
    %v127 = vxor.u32 %v122, 2147483648
    %v128 = vsel %vm126, %v121, %v127
    %vm129 = vcmp.eq.s32.totalorder %v124, 2
    %v130 = vxor.u32 %v121, 2147483648
    %v131 = vsel %vm129, %v130, %v122
    %v132 = vsel %vm125, %v128, %v131
    %v133 = vsel %vm123, nan, %v132
    %v134 = vand.u32 2147483647, %v30
    %vm135 = vcmp.le.f32.partialorder %v134, 0.7853982
    %vm136 = vcmp.lt.s32.totalorder %v30, 0
    %v137 = vand.u32 %v30, 2139095040
    %v138 = vshrl.u32 %v137, 23
    %v139 = vsub.s32 %v138, 127
    %v140 = vand.u32 2147483647, %v30
    %v141 = vand.u32 %v140, 8388607
    %v142 = vor.u32 %v141, 8388608
    %v143 = vsub.s32 0, %v142
    %v144 = vadd.s32 %v139, 1
    %vm145 = vcmp.gt.s32.totalorder %v144, 0
    %v146 = vsel %vm145, %v144, 0
    %v147 = vshrl.u32 %v146, 5
    %v148 = vand.u32 %v146, 31
    %v149 = vsub.s32 32, %v148
    %v150 = vshrl.u32 683565275, %v149
    %v151 = vshll.u32 683565275, %v148
    %v152 = vshrl.u32 2475754826, %v149
    %v153 = vor.u32 %v151, %v152
    %v154 = vshll.u32 2475754826, %v148
    %v155 = vshrl.u32 2131351028, %v149
    %v156 = vor.u32 %v154, %v155
    %v157 = vshll.u32 2131351028, %v148
    %v158 = vshrl.u32 2102212464, %v149
    %v159 = vor.u32 %v157, %v158
    %v160 = vshll.u32 2102212464, %v148
    %v161 = vshrl.u32 920167782, %v149
    %v162 = vor.u32 %v160, %v161
    %v163 = vshll.u32 920167782, %v148
    %v164 = vshrl.u32 1326507024, %v149
    %v165 = vor.u32 %v163, %v164
    %vm166 = vcmp.lt.s32.totalorder %v147, 1
    %vm167 = vcmp.lt.s32.totalorder %v147, 2
    %vm168 = vcmp.lt.s32.totalorder %v147, 3
    %vm169 = vcmp.lt.s32.totalorder %v147, 4
    %v170 = vsel %vm166, %v150, %v153
    %v171 = vsel %vm169, %v159, 2102212464
    %v172 = vsel %vm168, %v156, %v171
    %v173 = vsel %vm167, %v170, %v172
    %v174 = vsel %vm166, %v153, %v156
    %v175 = vsel %vm169, %v162, 920167782
    %v176 = vsel %vm168, %v159, %v175
    %v177 = vsel %vm167, %v174, %v176
    %v178 = vsel %vm166, %v156, %v159
    %v179 = vsel %vm169, %v165, 1326507024
    %v180 = vsel %vm168, %v162, %v179
    %v181 = vsel %vm167, %v178, %v180
    %v182 = vshll.u32 %v142, 8
    %v183 = vmul.u32.u64.compose %v182, %v181
    %v184 = vextract.low.u32 %v183
    %v185 = vextract.high.u32 %v183
    %v186 = vmul.u32.u64.compose %v182, %v177
    %v187 = vextract.low.u32 %v186
    %v188 = vextract.high.u32 %v186
    %v189 = vmul.u32 %v182, %v173
    %v190 = vadd.s32 %v185, %v187
    %vm191 = vc.u32 %v185, %v187
    %v192 = vadd.s32 %v188, 1
    %v193 = vsel %vm191, %v192, %v188
    %v194 = vadd.s32 %v189, %v193
    %v195 = vadd.s32 %v194, 536870912
    %v196 = vshrl.u32 %v195, 30
    %v197 = vshll.u32 %v196, 30
    %v198 = vsub.s32 %v194, %v197
    %vm199 = vcmp.lt.s32.totalorder %v198, 0
    %v200 = vsub.s32 0, %v198
    %v201 = vsel %vm199, %v200, %v198
    %v202 = vclz %v201
    %v203 = vsub.s32 %v202, 2
    %vm204 = vcmp.gt.s32.totalorder 0, %v203
    %v205 = vsel %vm204, 0, %v203
    %v206 = vsub.s32 32, %v205
    %v207 = vshll.u32 %v198, %v205
    %v208 = vshrl.u32 %v190, %v206
    %v209 = vor.u32 %v207, %v208
    %v210 = vsub.s32 4294967266, %v205
    %v211 = vadd.s32 %v210, 127
    %v212 = vshll.u32 %v211, 23
    %v213 = vor.u32 4788187, %v212
    %v214 = vand.u32 2147483647, %v213
    %v216 = vcvt.s32.f32 %v209
    %v217 = vmul.f32 %v216, %v214
    %v218 = vxor.u32 %v217, 2147483648
    %v219 = vsel %vm136, %v218, %v217
    %v220 = vsub.s32 4, %v196
    %v221 = vsel %vm136, %v220, %v196
    %v222 = vsel %vm135, %v30, %v219
    %v223 = vsel %vm135, 0, %v221
    %v224 = vcosq.f32.pop %v222
    %v225 = vsinq.f32.pop %v222
    %vm226 = vweird.f32 %v30
    %v227 = vand.u32 %v223, 3
    %vm228 = vcmp.lt.s32.totalorder %v227, 2
    %vm229 = vcmp.eq.s32.totalorder %v227, 0
    %v230 = vxor.u32 %v225, 2147483648
    %v231 = vsel %vm229, %v224, %v230
    %vm232 = vcmp.eq.s32.totalorder %v227, 2
    %v233 = vxor.u32 %v224, 2147483648
    %v234 = vsel %vm232, %v233, %v225
    %v235 = vsel %vm228, %v231, %v234
    %v236 = vsel %vm226, nan, %v235
    %v237 = vand.u32 2147483647, %v29
    %vm238 = vcmp.le.f32.partialorder %v237, 0.7853982
    %vm239 = vcmp.lt.s32.totalorder %v29, 0
    %v240 = vand.u32 %v29, 2139095040
    %v241 = vshrl.u32 %v240, 23
    %v242 = vsub.s32 %v241, 127
    %v243 = vand.u32 2147483647, %v29
    %v244 = vand.u32 %v243, 8388607
    %v245 = vor.u32 %v244, 8388608
    %v246 = vsub.s32 0, %v245
    %v247 = vadd.s32 %v242, 1
    %vm248 = vcmp.gt.s32.totalorder %v247, 0
    %v249 = vsel %vm248, %v247, 0
    %v250 = vshrl.u32 %v249, 5
    %v251 = vand.u32 %v249, 31
    %v252 = vsub.s32 32, %v251
    %v253 = vshrl.u32 683565275, %v252
    %v254 = vshll.u32 683565275, %v251
    %v255 = vshrl.u32 2475754826, %v252
    %v256 = vor.u32 %v254, %v255
    %v257 = vshll.u32 2475754826, %v251
    %v258 = vshrl.u32 2131351028, %v252
    %v259 = vor.u32 %v257, %v258
    %v260 = vshll.u32 2131351028, %v251
    %v261 = vshrl.u32 2102212464, %v252
    %v262 = vor.u32 %v260, %v261
    %v263 = vshll.u32 2102212464, %v251
    %v264 = vshrl.u32 920167782, %v252
    %v265 = vor.u32 %v263, %v264
    %v266 = vshll.u32 920167782, %v251
    %v267 = vshrl.u32 1326507024, %v252
    %v268 = vor.u32 %v266, %v267
    %vm269 = vcmp.lt.s32.totalorder %v250, 1
    %vm270 = vcmp.lt.s32.totalorder %v250, 2
    %vm271 = vcmp.lt.s32.totalorder %v250, 3
    %vm272 = vcmp.lt.s32.totalorder %v250, 4
    %v273 = vsel %vm269, %v253, %v256
    %v274 = vsel %vm272, %v262, 2102212464
    %v275 = vsel %vm271, %v259, %v274
    %v276 = vsel %vm270, %v273, %v275
    %v277 = vsel %vm269, %v256, %v259
    %v278 = vsel %vm272, %v265, 920167782
    %v279 = vsel %vm271, %v262, %v278
    %v280 = vsel %vm270, %v277, %v279
    %v281 = vsel %vm269, %v259, %v262
    %v282 = vsel %vm272, %v268, 1326507024
    %v283 = vsel %vm271, %v265, %v282
    %v284 = vsel %vm270, %v281, %v283
    %v285 = vshll.u32 %v245, 8
    %v286 = vmul.u32.u64.compose %v285, %v284
    %v287 = vextract.low.u32 %v286
    %v288 = vextract.high.u32 %v286
    %v289 = vmul.u32.u64.compose %v285, %v280
    %v290 = vextract.low.u32 %v289
    %v291 = vextract.high.u32 %v289
    %v292 = vmul.u32 %v285, %v276
    %v293 = vadd.s32 %v288, %v290
    %vm294 = vc.u32 %v288, %v290
    %v295 = vadd.s32 %v291, 1
    %v296 = vsel %vm294, %v295, %v291
    %v297 = vadd.s32 %v292, %v296
    %v298 = vadd.s32 %v297, 536870912
    %v299 = vshrl.u32 %v298, 30
    %v300 = vshll.u32 %v299, 30
    %v301 = vsub.s32 %v297, %v300
    %vm302 = vcmp.lt.s32.totalorder %v301, 0
    %v303 = vsub.s32 0, %v301
    %v304 = vsel %vm302, %v303, %v301
    %v305 = vclz %v304
    %v306 = vsub.s32 %v305, 2
    %vm307 = vcmp.gt.s32.totalorder 0, %v306
    %v308 = vsel %vm307, 0, %v306
    %v309 = vsub.s32 32, %v308
    %v310 = vshll.u32 %v301, %v308
    %v311 = vshrl.u32 %v293, %v309
    %v312 = vor.u32 %v310, %v311
    %v313 = vsub.s32 4294967266, %v308
    %v314 = vadd.s32 %v313, 127
    %v315 = vshll.u32 %v314, 23
    %v316 = vor.u32 4788187, %v315
    %v317 = vand.u32 2147483647, %v316
    %v319 = vcvt.s32.f32 %v312
    %v320 = vmul.f32 %v319, %v317
    %v321 = vxor.u32 %v320, 2147483648
    %v322 = vsel %vm239, %v321, %v320
    %v323 = vsub.s32 4, %v299
    %v324 = vsel %vm239, %v323, %v299
    %v325 = vsel %vm238, %v29, %v322
    %v326 = vsel %vm238, 0, %v324
    %v327 = vcosq.f32.pop %v325
    %v328 = vsinq.f32.pop %v325
    %vm329 = vweird.f32 %v29
    %v330 = vadd.s32 %v326, 3
    %v331 = vand.u32 %v330, 3
    %vm332 = vcmp.lt.s32.totalorder %v331, 2
    %vm333 = vcmp.eq.s32.totalorder %v331, 0
    %v334 = vxor.u32 %v328, 2147483648
    %v335 = vsel %vm333, %v327, %v334
    %vm336 = vcmp.eq.s32.totalorder %v331, 2
    %v337 = vxor.u32 %v327, 2147483648
    %v338 = vsel %vm336, %v337, %v328
    %v339 = vsel %vm332, %v335, %v338
    %v340 = vsel %vm329, nan, %v339
    %v341 = vand.u32 2147483647, %v30
    %vm342 = vcmp.le.f32.partialorder %v341, 0.7853982
    %vm343 = vcmp.lt.s32.totalorder %v30, 0
    %v344 = vand.u32 %v30, 2139095040
    %v345 = vshrl.u32 %v344, 23
    %v346 = vsub.s32 %v345, 127
    %v347 = vand.u32 2147483647, %v30
    %v348 = vand.u32 %v347, 8388607
    %v349 = vor.u32 %v348, 8388608
    %v350 = vsub.s32 0, %v349
    %v351 = vadd.s32 %v346, 1
    %vm352 = vcmp.gt.s32.totalorder %v351, 0
    %v353 = vsel %vm352, %v351, 0
    %v354 = vshrl.u32 %v353, 5
    %v355 = vand.u32 %v353, 31
    %v356 = vsub.s32 32, %v355
    %v357 = vshrl.u32 683565275, %v356
    %v358 = vshll.u32 683565275, %v355
    %v359 = vshrl.u32 2475754826, %v356
    %v360 = vor.u32 %v358, %v359
    %v361 = vshll.u32 2475754826, %v355
    %v362 = vshrl.u32 2131351028, %v356
    %v363 = vor.u32 %v361, %v362
    %v364 = vshll.u32 2131351028, %v355
    %v365 = vshrl.u32 2102212464, %v356
    %v366 = vor.u32 %v364, %v365
    %v367 = vshll.u32 2102212464, %v355
    %v368 = vshrl.u32 920167782, %v356
    %v369 = vor.u32 %v367, %v368
    %v370 = vshll.u32 920167782, %v355
    %v371 = vshrl.u32 1326507024, %v356
    %v372 = vor.u32 %v370, %v371
    %vm373 = vcmp.lt.s32.totalorder %v354, 1
    %vm374 = vcmp.lt.s32.totalorder %v354, 2
    %vm375 = vcmp.lt.s32.totalorder %v354, 3
    %vm376 = vcmp.lt.s32.totalorder %v354, 4
    %v377 = vsel %vm373, %v357, %v360
    %v378 = vsel %vm376, %v366, 2102212464
    %v379 = vsel %vm375, %v363, %v378
    %v380 = vsel %vm374, %v377, %v379
    %v381 = vsel %vm373, %v360, %v363
    %v382 = vsel %vm376, %v369, 920167782
    %v383 = vsel %vm375, %v366, %v382
    %v384 = vsel %vm374, %v381, %v383
    %v385 = vsel %vm373, %v363, %v366
    %v386 = vsel %vm376, %v372, 1326507024
    %v387 = vsel %vm375, %v369, %v386
    %v388 = vsel %vm374, %v385, %v387
    %v389 = vshll.u32 %v349, 8
    %v390 = vmul.u32.u64.compose %v389, %v388
    %v391 = vextract.low.u32 %v390
    %v392 = vextract.high.u32 %v390
    %v393 = vmul.u32.u64.compose %v389, %v384
    %v394 = vextract.low.u32 %v393
    %v395 = vextract.high.u32 %v393
    %v396 = vmul.u32 %v389, %v380
    %v397 = vadd.s32 %v392, %v394
    %vm398 = vc.u32 %v392, %v394
    %v399 = vadd.s32 %v395, 1
    %v400 = vsel %vm398, %v399, %v395
    %v401 = vadd.s32 %v396, %v400
    %v402 = vadd.s32 %v401, 536870912
    %v403 = vshrl.u32 %v402, 30
    %v404 = vshll.u32 %v403, 30
    %v405 = vsub.s32 %v401, %v404
    %vm406 = vcmp.lt.s32.totalorder %v405, 0
    %v407 = vsub.s32 0, %v405
    %v408 = vsel %vm406, %v407, %v405
    %v409 = vclz %v408
    %v410 = vsub.s32 %v409, 2
    %vm411 = vcmp.gt.s32.totalorder 0, %v410
    %v412 = vsel %vm411, 0, %v410
    %v413 = vsub.s32 32, %v412
    %v414 = vshll.u32 %v405, %v412
    %v415 = vshrl.u32 %v397, %v413
    %v416 = vor.u32 %v414, %v415
    %v417 = vsub.s32 4294967266, %v412
    %v418 = vadd.s32 %v417, 127
    %v419 = vshll.u32 %v418, 23
    %v420 = vor.u32 4788187, %v419
    %v421 = vand.u32 2147483647, %v420
    %v423 = vcvt.s32.f32 %v416
    %v424 = vmul.f32 %v423, %v421
    %v425 = vxor.u32 %v424, 2147483648
    %v426 = vsel %vm343, %v425, %v424
    %v427 = vsub.s32 4, %v403
    %v428 = vsel %vm343, %v427, %v403
    %v429 = vsel %vm342, %v30, %v426
    %v430 = vsel %vm342, 0, %v428
    %v431 = vcosq.f32.pop %v429
    %v432 = vsinq.f32.pop %v429
    %vm433 = vweird.f32 %v30
    %v434 = vadd.s32 %v430, 3
    %v435 = vand.u32 %v434, 3
    %vm436 = vcmp.lt.s32.totalorder %v435, 2
    %vm437 = vcmp.eq.s32.totalorder %v435, 0
    %v438 = vxor.u32 %v432, 2147483648
    %v439 = vsel %vm437, %v431, %v438
    %vm440 = vcmp.eq.s32.totalorder %v435, 2
    %v441 = vxor.u32 %v431, 2147483648
    %v442 = vsel %vm440, %v441, %v432
    %v443 = vsel %vm436, %v439, %v442
    %v444 = vsel %vm433, nan, %v443
    %v445 = vmul.f32 %v133, %v133
    %v446 = vmul.f32 %v236, %v236
    %v447 = vmul.f32 %v340, %v340
    %v448 = vmul.f32 %v444, %v444
    %v449 = vsub.f32 %v445, %v447
    %v450 = vsub.f32 %v446, %v448
    %v451 = vmul.f32 %v340, %v133
    %v452 = vmul.f32 %v444, %v236
    %v453 = vadd.f32 %v451, %v451
    %v454 = vadd.f32 %v452, %v452
    %v455 = vmul.f32 %v449, %v133
    %v456 = vmul.f32 %v450, %v236
    %v457 = vmul.f32 %v453, %v340
    %v458 = vmul.f32 %v454, %v444
    %v459 = vsub.f32 %v455, %v457
    %v460 = vsub.f32 %v456, %v458
    %v461 = vmul.f32 %v453, %v133
    %v462 = vmul.f32 %v454, %v236
    %v463 = vmul.f32 %v449, %v340
    %v464 = vmul.f32 %v450, %v444
    %v465 = vadd.f32 %v461, %v463
    %v466 = vadd.f32 %v462, %v464
    %v467 = vmul.f32 %v459, %v133
    %v468 = vmul.f32 %v460, %v236
    %v469 = vmul.f32 %v465, %v340
    %v470 = vmul.f32 %v466, %v444
    %v471 = vsub.f32 %v467, %v469
    %v472 = vsub.f32 %v468, %v470
    %v473 = vmul.f32 %v465, %v133
    %v474 = vmul.f32 %v466, %v236
    %v475 = vmul.f32 %v459, %v340
    %v476 = vmul.f32 %v460, %v444
    %v477 = vadd.f32 %v473, %v475
    %v478 = vadd.f32 %v474, %v476
    %v479 = vmul.f32 %v471, %v133
    %v480 = vmul.f32 %v472, %v236
    %v481 = vmul.f32 %v477, %v340
    %v482 = vmul.f32 %v478, %v444
    %v483 = vsub.f32 %v479, %v481
    %v484 = vsub.f32 %v480, %v482
    %v485 = vmul.f32 %v477, %v133
    %v486 = vmul.f32 %v478, %v236
    %v487 = vmul.f32 %v471, %v340
    %v488 = vmul.f32 %v472, %v444
    %v489 = vadd.f32 %v485, %v487
    %v490 = vadd.f32 %v486, %v488
    %v491 = vmul.f32 %v483, %v133
    %v492 = vmul.f32 %v484, %v236
    %v493 = vmul.f32 %v489, %v340
    %v494 = vmul.f32 %v490, %v444
    %v495 = vsub.f32 %v491, %v493
    %v496 = vsub.f32 %v492, %v494
    %v497 = vmul.f32 %v489, %v133
    %v498 = vmul.f32 %v490, %v236
    %v499 = vmul.f32 %v483, %v340
    %v500 = vmul.f32 %v484, %v444
    %v501 = vadd.f32 %v497, %v499
    %v502 = vadd.f32 %v498, %v500
    %v503 = vmul.f32 %v495, %v133
    %v504 = vmul.f32 %v496, %v236
    %v505 = vmul.f32 %v501, %v340
    %v506 = vmul.f32 %v502, %v444
    %v507 = vsub.f32 %v503, %v505
    %v508 = vsub.f32 %v504, %v506
    %v509 = vmul.f32 %v501, %v133
    %v510 = vmul.f32 %v502, %v236
    %v511 = vmul.f32 %v495, %v340
    %v512 = vmul.f32 %v496, %v444
    %v513 = vadd.f32 %v509, %v511
    %v514 = vadd.f32 %v510, %v512
    %v515 = vmul.f32 %v507, %v133
    %v516 = vmul.f32 %v508, %v236
    %v517 = vmul.f32 %v513, %v340
    %v518 = vmul.f32 %v514, %v444
    %v519 = vsub.f32 %v515, %v517
    %v520 = vsub.f32 %v516, %v518
    %v521 = vmul.f32 %v513, %v133
    %v522 = vmul.f32 %v514, %v236
    %v523 = vmul.f32 %v507, %v340
    %v524 = vmul.f32 %v508, %v444
    %v525 = vadd.f32 %v521, %v523
    %v526 = vadd.f32 %v522, %v524
    %529 = vrot.lane.b32.xlu0 %v449, 4
    %v530 = vpop.permute.xlu0 %529
    %531 = vrot.lane.b32.xlu0 %v450, 4
    %v532 = vpop.permute.xlu0 %531
    %537 = vrot.lane.b32.xlu0 %v459, 8
    %v538 = vpop.permute.xlu0 %537
    %539 = vrot.lane.b32.xlu0 %v460, 8
    %v540 = vpop.permute.xlu0 %539
    %545 = vrot.lane.b32.xlu0 %v471, 12
    %v546 = vpop.permute.xlu0 %545
    %547 = vrot.lane.b32.xlu0 %v472, 12
    %v548 = vpop.permute.xlu0 %547
    %553 = vrot.lane.b32.xlu0 %v483, 16
    %v554 = vpop.permute.xlu0 %553
    %555 = vrot.lane.b32.xlu0 %v484, 16
    %v556 = vpop.permute.xlu0 %555
    %561 = vrot.lane.b32.xlu0 %v495, 20
    %v562 = vpop.permute.xlu0 %561
    %563 = vrot.lane.b32.xlu0 %v496, 20
    %v564 = vpop.permute.xlu0 %563
    %569 = vrot.lane.b32.xlu0 %v507, 24
    %v570 = vpop.permute.xlu0 %569
    %571 = vrot.lane.b32.xlu0 %v508, 24
    %v572 = vpop.permute.xlu0 %571
    %577 = vrot.lane.b32.xlu0 %v519, 28
    %v578 = vpop.permute.xlu0 %577
    %579 = vrot.lane.b32.xlu0 %v520, 28
    %v580 = vpop.permute.xlu0 %579
    %585 = vrot.lane.b32.xlu0 %v340, 32
    %v586 = vpop.permute.xlu0 %585
    %587 = vrot.lane.b32.xlu0 %v444, 32
    %v588 = vpop.permute.xlu0 %587
    %593 = vrot.lane.b32.xlu0 %v453, 36
    %v594 = vpop.permute.xlu0 %593
    %595 = vrot.lane.b32.xlu0 %v454, 36
    %v596 = vpop.permute.xlu0 %595
    %601 = vrot.lane.b32.xlu0 %v465, 40
    %v602 = vpop.permute.xlu0 %601
    %603 = vrot.lane.b32.xlu0 %v466, 40
    %v604 = vpop.permute.xlu0 %603
    %609 = vrot.lane.b32.xlu0 %v477, 44
    %v610 = vpop.permute.xlu0 %609
    %611 = vrot.lane.b32.xlu0 %v478, 44
    %v612 = vpop.permute.xlu0 %611
    %617 = vrot.lane.b32.xlu0 %v489, 48
    %v618 = vpop.permute.xlu0 %617
    %619 = vrot.lane.b32.xlu0 %v490, 48
    %v620 = vpop.permute.xlu0 %619
    %625 = vrot.lane.b32.xlu0 %v501, 52
    %v626 = vpop.permute.xlu0 %625
    %627 = vrot.lane.b32.xlu0 %v502, 52
    %v628 = vpop.permute.xlu0 %627
    %633 = vrot.lane.b32.xlu0 %v513, 56
    %v634 = vpop.permute.xlu0 %633
    %635 = vrot.lane.b32.xlu0 %v514, 56
    %v636 = vpop.permute.xlu0 %635
    %641 = vrot.lane.b32.xlu0 %v525, 60
    %v642 = vpop.permute.xlu0 %641
    %643 = vrot.lane.b32.xlu0 %v526, 60
    %v644 = vpop.permute.xlu0 %643
    %vm647 = vcmask 31744
    %v648 = vsel %vm647, %v133, %v530
    %v649 = vsel %vm647, %v236, %v532
    %vm650 = vcmask 64512
    %v651 = vsel %vm650, %v648, %v538
    %v652 = vsel %vm650, %v649, %v540
    %vm653 = vcmask 97280
    %v654 = vsel %vm653, %v651, %v546
    %v655 = vsel %vm653, %v652, %v548
    %vm656 = vcmask 130048
    %v657 = vsel %vm656, %v654, %v554
    %v658 = vsel %vm656, %v655, %v556
    %vm659 = vcmask 162816
    %v660 = vsel %vm659, %v657, %v562
    %v661 = vsel %vm659, %v658, %v564
    %vm662 = vcmask 195584
    %v663 = vsel %vm662, %v660, %v570
    %v664 = vsel %vm662, %v661, %v572
    %vm665 = vcmask 228352
    %v666 = vsel %vm665, %v663, %v578
    %v667 = vsel %vm665, %v664, %v580
    %vm668 = vcmask 261120
    %v669 = vsel %vm668, %v666, %v586
    %v670 = vsel %vm668, %v667, %v588
    %vm671 = vcmask 293888
    %v672 = vsel %vm671, %v669, %v594
    %v673 = vsel %vm671, %v670, %v596
    %vm674 = vcmask 326656
    %v675 = vsel %vm674, %v672, %v602
    %v676 = vsel %vm674, %v673, %v604
    %vm677 = vcmask 359424
    %v678 = vsel %vm677, %v675, %v610
    %v679 = vsel %vm677, %v676, %v612
    %vm680 = vcmask 392192
    %v681 = vsel %vm680, %v678, %v618
    %v682 = vsel %vm680, %v679, %v620
    %vm683 = vcmask 424960
    %v684 = vsel %vm683, %v681, %v626
    %v685 = vsel %vm683, %v682, %v628
    %vm686 = vcmask 457728
    %v687 = vsel %vm686, %v684, %v634
    %v688 = vsel %vm686, %v685, %v636
    %vm689 = vcmask 490496
    %v690 = vsel %vm689, %v687, %v642
    %v691 = vsel %vm689, %v688, %v644
    %v692 = vld [vmem:[#allocation2] sm:$0xff]
    %v693 = vld [vmem:[#allocation2 + $0x8] sm:$0xff]
    %v694 = vld [vmem:[#allocation2 + $0x10] sm:$0xff]
    %v695 = vld [vmem:[#allocation2 + $0x18] sm:$0xff]
    %v696 = vld [vmem:[#allocation2 + $0x20] sm:$0xff]
    %v697 = vld [vmem:[#allocation2 + $0x28] sm:$0xff]
    %v698 = vld [vmem:[#allocation2 + $0x30] sm:$0xff]
    %v699 = vld [vmem:[#allocation2 + $0x38] sm:$0xff]
    %v700 = vld [vmem:[%s2] sm:$0x1]
    %v702 = vlaneseq
    %v703 = vshrl.u32 %v702, 7
    %v704 = vsub.s32 0, %v703
    %v705 = vrot.slane %v700, %v704
    %vm707 = vcmask 523264
    %v709 = vsel %vm707, %v690, 0
    %v712 = vsel %vm707, %v691, 0
    %714 = vmatprep.subr.mxu0 0.0
    %715 = vmatpush1.msra.mxu0 %v692
    %716 = vmatprep.subr.mxu0 0.0
    %717 = vmatpush1.msra.mxu0 %v693
    %718 = vmatprep.subr.mxu0 0.0
    %719 = vmatpush1.msra.mxu0 %v694
    %720 = vmatprep.subr.mxu0 0.0
    %721 = vmatpush1.msra.mxu0 %v695
    %722 = vmatprep.subr.mxu0 0.0
    %723 = vmatpush1.msra.mxu0 %v696
    %724 = vmatprep.subr.mxu0 0.0
    %725 = vmatpush1.msra.mxu0 %v697
    %726 = vmatprep.subr.mxu0 0.0
    %727 = vmatpush1.msra.mxu0 %v698
    %728 = vmatprep.subr.mxu0 0.0
    %729 = vmatpush1.msra.mxu0 %v699
    %730 = vmatprep.subr.mxu0 0.0
    %731 = vmatpush1.msra.mxu0 0.0
    %732 = vmatprep.subr.mxu0 0.0
    %733 = vmatpush1.msra.mxu0 0.0
    %734 = vmatprep.subr.mxu0 0.0
    %735 = vmatpush1.msra.mxu0 0.0
    %736 = vmatprep.subr.mxu0 0.0
    %737 = vmatpush1.msra.mxu0 0.0
    %738 = vmatprep.subr.mxu0 0.0
    %739 = vmatpush1.msra.mxu0 0.0
    %740 = vmatprep.subr.mxu0 0.0
    %741 = vmatpush1.msra.mxu0 0.0
    %742 = vmatprep.subr.mxu0 0.0
    %743 = vmatpush1.msra.mxu0 0.0
    %744 = vmatprep.subr.mxu0 0.0
    %745 = vmatpush1.msra.mxu0 0.0
    %746 = vmatprep.subr.mxu0 0.0
    %747 = vmatpush1.msra.mxu0 0.0
    %748 = vmatprep.subr.mxu0 0.0
    %749 = vmatpush1.msra.mxu0 0.0
    %750 = vmatprep.subr.mxu0 0.0
    %751 = vmatpush1.msra.mxu0 0.0
    %752 = vmatprep.subr.mxu0 0.0
    %753 = vmatpush1.msra.mxu0 0.0
    %754 = vmatprep.subr.mxu0 0.0
    %755 = vmatpush1.msra.mxu0 0.0
    %756 = vmatprep.subr.mxu0 0.0
    %757 = vmatpush1.msra.mxu0 0.0
    %758 = vmatprep.subr.mxu0 0.0
    %759 = vmatpush1.msra.mxu0 0.0
    %760 = vmatprep.subr.mxu0 0.0
    %761 = vmatpush1.msra.mxu0 0.0
    %762 = vmatprep.subr.mxu0 0.0
    %763 = vmatpush1.msra.mxu0 0.0
    %764 = vmatprep.subr.mxu0 0.0
    %765 = vmatpush1.msra.mxu0 0.0
    %766 = vmatprep.subr.mxu0 0.0
    %767 = vmatpush1.msra.mxu0 0.0
    %768 = vmatprep.subr.mxu0 0.0
    %769 = vmatpush1.msra.mxu0 0.0
    %770 = vmatprep.subr.mxu0 0.0
    %771 = vmatpush1.msra.mxu0 0.0
    %772 = vmatprep.subr.mxu0 0.0
    %773 = vmatpush1.msra.mxu0 0.0
    %774 = vmatprep.subr.mxu0 0.0
    %775 = vmatpush1.msra.mxu0 0.0
    %776 = vmatprep.subr.mxu0 0.0
    %777 = vmatpush1.msra.mxu0 0.0
    %778 = vmatprep.mubr.f32.mxu0 0.0
    %779 = vmatmul.mubr.f32.gmra.mrb[0].mxu0 %v709
    %v780 = vpop.f32.mrb[0].mxu0
    %v781 = vadd.f32 %v705, %v780
    %v782 = vpop.f32.mrb[0].mxu0
    %783 = vmatprep.mubr.f32.mxu0 0.0
    %784 = vmatmul.mubr.f32.gmra.mrb[0].mxu0 %v712
    %v785 = vpop.f32.mrb[0].mxu0
    %v786 = vadd.f32 %v705, %v785
    %v787 = vpop.f32.mrb[0].mxu0
    %788 = vdwg.mxu0
    %789 = vst [vmem:[#allocation5] sm:$0xff] %v781
    %790 = vst [vmem:[#allocation5 + $0x8] sm:$0xff] %v786
    // Predicated region
    $region18: #{tpu_custom_call.1} parent=1 // pred_check
      _
    $region19: #{tpu_custom_call.1} parent=1 // pred_check_branch
      %792 = sbr.rel (0) target = $region21
    $region20: #{tpu_custom_call.1} parent=1 // pred_region
      %s794 = ssub.s32 256, 256
      %795 = vsyncadd [#allocation4], %s794
      %s796 = sshll.u32 [#allocation5], 4
      %s797 = int_to_ptr.vmem [resolvable:$true] %s796
      %802 = dma.vmem_to_hbm [thread:$0]  %s797, 256, %s3, [#allocation4], 128, 128, 8
    $region21: #{tpu_custom_call.1} parent=1 // pred_fallthru
      _
    // Predicated region
    $region22: #{tpu_custom_call.1} parent=1 // pred_check
      _
    $region23: #{tpu_custom_call.1} parent=1 // pred_check_branch
      %804 = sbr.rel (0) target = $region25
    $region24: #{tpu_custom_call.1} parent=1 // pred_region
      %805 = dma.done [#allocation4], 256
    $region25: #{tpu_custom_call.1} parent=1 // pred_fallthru
      _
    %806 = vsyncpa [#allocation3], 1
    %807 = vsyncpa [#allocation4], 1

</llo_original>
